<compile_context>
chip_gen: v7x
topology: tpu7x:2x2x1
jax: 0.10.0
libtpu: 0.0.40
codegen_flags: <defaults>
</compile_context>

<pallas_src>
import functools

import jax
import jax.numpy as jnp
from jax import lax
from jax.experimental import pallas as pl
from jax.experimental.pallas import tpu as pltpu


def _round_up(x: int, m: int) -> int:
    return (x + m - 1) // m * m


def _sublane_granule(dtype) -> int:
    # Sub-32-bit dtypes pack along sublanes: min sublane tile is dtype dependent.
    return {4: 8, 2: 16, 1: 32}.get(jnp.dtype(dtype).itemsize, 8)


def _vmem_capacity_bytes() -> int:
    try:
        return int(pltpu.get_tpu_info().vmem_capacity_bytes)
    except Exception:
        return 64 * 1024 * 1024  # conservative (v7x per-core VMEM)


def _pick_tile(dim: int, target: int, granule: int) -> int:
    """Largest multiple of `granule` <= target that divides round_up(dim, granule)."""
    padded = _round_up(max(dim, 1), granule)
    cap = min(_round_up(max(target, granule), granule), padded)
    t = cap
    while t > granule:
        if padded % t == 0:
            return t
        t -= granule
    return granule


def _gelu_f32(x, approximate: str):
    # x is float32
    if approximate == "tanh":
        c = jnp.float32(0.7978845608028654)  # sqrt(2/pi)
        return 0.5 * x * (1.0 + jnp.tanh(c * (x + jnp.float32(0.044715) * x * x * x)))
    # exact ("none"): 0.5 * x * (1 + erf(x / sqrt(2)))
    return 0.5 * x * (1.0 + lax.erf(x * jnp.float32(0.7071067811865476)))


def _gelu_proj_kernel(x_ref, w_ref, b_ref, o_ref, acc_ref, *, approximate: str):
    # Grid: (i over M tiles, j over N tiles, k over K tiles); K is the reduction axis.
    k = pl.program_id(2)

    @pl.when(k == 0)
    def _():
        # Fold the bias into the accumulator init (one fewer VPU pass in the epilogue).
        acc_ref[...] = jnp.broadcast_to(b_ref[...].astype(jnp.float32), acc_ref.shape)

    # Plain NN contraction: x (tm, tk) @ w^T-tile (tk, tn) -> (tm, tn), f32 accumulate.
    # For f32 inputs, request full-precision MXU passes to match f32 Linear semantics.
    prec = lax.Precision.HIGHEST if x_ref.dtype == jnp.float32 else None
    acc_ref[...] += jnp.dot(x_ref[...], w_ref[...],
                            preferred_element_type=jnp.float32, precision=prec)

    @pl.when(k == pl.num_programs(2) - 1)
    def _():
        o_ref[...] = _gelu_f32(acc_ref[...], approximate).astype(o_ref.dtype)


def gelu_proj(hidden_states, weight, bias, *, approximate: str = "none",
              tm=None, tn=None, tk=None):
    """GELU(hidden_states @ weight.T + bias).

    hidden_states: (..., dim_in); weight: (dim_out, dim_in) [PyTorch nn.Linear layout];
    bias: (dim_out,). Returns shape (..., dim_out) in hidden_states.dtype.
    """
    *lead, dim_in = hidden_states.shape
    dim_out, dim_in_w = weight.shape
    assert dim_in_w == dim_in, "weight must be (dim_out, dim_in)"
    assert bias.shape == (dim_out,)

    M = 1
    for d in lead:
        M *= d
    x2d = hidden_states.reshape(M, dim_in)

    x_bytes = jnp.dtype(x2d.dtype).itemsize
    w_bytes = jnp.dtype(weight.dtype).itemsize
    b_bytes = jnp.dtype(bias.dtype).itemsize
    o_bytes = x_bytes

    vmem_cap = _vmem_capacity_bytes()
    big_vmem = vmem_cap >= 96 * 1024 * 1024  # v5e/v6e (128 MiB) vs v7x (64 MiB)

    # Generation-/dtype-aware default tile targets: large enough for MXU-bound GEMMs.
    t_mn = (1024 if big_vmem else 768) if x_bytes <= 2 else (768 if big_vmem else 512)
    tm_t = tm if tm is not None else t_mn
    tn_t = tn if tn is not None else t_mn
    tk_t = tk if tk is not None else 512

    m_granule = _sublane_granule(x2d.dtype)
    tm = _pick_tile(M, tm_t, m_granule)
    tn = _pick_tile(dim_out, tn_t, 128)
    tk = _pick_tile(dim_in, tk_t, 128)

    Mp = _round_up(M, m_granule)
    Np = _round_up(dim_out, 128)
    Kp = _round_up(dim_in, 128)

    # v7x: keep the "parallel" portion of the grid >= 2 tiles so the second
    # TensorCore isn't idle, when the shape allows it.
    if (Mp // tm) * (Np // tn) < 2:
        if Np >= 256:
            tn = _pick_tile(dim_out, Np // 2, 128)
        elif Mp >= 2 * m_granule:
            tm = _pick_tile(M, Mp // 2, m_granule)

    # Pre-transpose the weight to (dim_in, dim_out) so the kernel contracts on the
    # weight tile's sublane dim (no per-K-step XLU transpose inside the kernel).
    # TODO(synk): in a real model, do this transpose once at parameter-load time.
    wt = weight.T

    # Zero-pad only up to the (sublane, 128) boundary (never full tile multiples);
    # aligned transformer dims take the no-pad path. Padded K contributes zeros to
    # the accumulation; padded M/N rows/cols are sliced off below.
    if (Mp, Kp) != (M, dim_in):
        x2d = jnp.pad(x2d, ((0, Mp - M), (0, Kp - dim_in)))
    if (Kp, Np) != (dim_in, dim_out):
        wt = jnp.pad(wt, ((0, Kp - dim_in), (0, Np - dim_out)))
    b2d = bias.reshape(1, dim_out)
    if Np != dim_out:
        b2d = jnp.pad(b2d, ((0, 0), (0, Np - dim_out)))

    # VMEM budget: double-buffered x/w/bias/out tiles + f32 accumulator + headroom,
    # capped comfortably under physical VMEM per generation.
    tile_vmem = (2 * tm * tk * x_bytes + 2 * tk * tn * w_bytes + 2 * tn * b_bytes
                 + 2 * tm * tn * o_bytes + tm * tn * 4)
    vmem_hi = (100 if big_vmem else 48) * 1024 * 1024
    vmem_limit = int(min(vmem_hi, max(int(tile_vmem * 1.25), 32 * 1024 * 1024)))

    cost = pl.CostEstimate(
        flops=2 * M * dim_out * dim_in,
        transcendentals=M * dim_out,
        bytes_accessed=(M * dim_in * x_bytes + dim_out * dim_in * w_bytes
                        + dim_out * b_bytes + M * dim_out * o_bytes),
    )

    kernel = functools.partial(_gelu_proj_kernel, approximate=approximate)
    out2d = pl.pallas_call(
        kernel,
        out_shape=jax.ShapeDtypeStruct((Mp, Np), hidden_states.dtype),
        grid_spec=pltpu.PrefetchScalarGridSpec(
            num_scalar_prefetch=0,
            grid=(Mp // tm, Np // tn, Kp // tk),
            in_specs=[
                pl.BlockSpec((tm, tk), lambda i, j, k: (i, k)),   # activations (M, K)
                pl.BlockSpec((tk, tn), lambda i, j, k: (k, j)),   # weight^T    (K, N)
                pl.BlockSpec((1, tn), lambda i, j, k: (0, j)),    # bias        (1, N)
            ],
            out_specs=pl.BlockSpec((tm, tn), lambda i, j, k: (i, j)),
            scratch_shapes=[pltpu.VMEM((tm, tn), jnp.float32)],
        ),
        compiler_params=pltpu.CompilerParams(
            dimension_semantics=("parallel", "parallel", "arbitrary"),
            vmem_limit_bytes=vmem_limit,
        ),
        cost_estimate=cost,
    )(x2d, wt, b2d)

    out = out2d[:M, :dim_out]
    return out.reshape(*lead, dim_out)


def _reference(hidden_states, weight, bias, approximate):
    y = (hidden_states.astype(jnp.float32) @ weight.astype(jnp.float32).T
         + bias.astype(jnp.float32))
    return _gelu_f32(y, approximate).astype(hidden_states.dtype)


if __name__ == "__main__":
    key = jax.random.PRNGKey(0)

    # Case 1: PyTorch-default exact GELU, small shape.
    k1, k2, k3, key = *jax.random.split(key, 3), jax.random.split(key, 4)[3]
    batch, seq, dim_in, dim_out = 2, 8, 32, 64
    bound = 1.0 / (dim_in ** 0.5)
    x = jax.random.normal(k1, (batch, seq, dim_in), dtype=jnp.float32)
    weight = jax.random.uniform(k2, (dim_out, dim_in), jnp.float32, -bound, bound)
    bias = jax.random.uniform(k3, (dim_out,), jnp.float32, -bound, bound)

    out = jax.block_until_ready(gelu_proj(x, weight, bias, approximate="none"))
    ref = _reference(x, weight, bias, "none")
    assert out.shape == (batch, seq, dim_out)
    assert jnp.allclose(out, ref, atol=1e-4, rtol=1e-4), "mismatch vs reference (none)"

    # Case 2: tanh approximation, ragged (non-128-aligned) shape to exercise padding.
    k1, k2, k3 = jax.random.split(key, 3)
    batch2, seq2, din2, dout2 = 3, 5, 48, 72
    bound2 = 1.0 / (din2 ** 0.5)
    x2 = jax.random.normal(k1, (batch2, seq2, din2), dtype=jnp.float32)
    w2 = jax.random.uniform(k2, (dout2, din2), jnp.float32, -bound2, bound2)
    b2 = jax.random.uniform(k3, (dout2,), jnp.float32, -bound2, bound2)

    out2 = jax.block_until_ready(gelu_proj(x2, w2, b2, approximate="tanh"))
    ref2 = _reference(x2, w2, b2, "tanh")
    assert out2.shape == (batch2, seq2, dout2)
    assert jnp.allclose(out2, ref2, atol=1e-4, rtol=1e-4), "mismatch vs reference (tanh)"

    print("KERNEL_OK")
</pallas_src>

<mosaic_0001>
module attributes {stable_mosaic.version = 11 : i64} {
  func.func @_gelu_proj_kernel(%arg0: i32, %arg1: i32, %arg2: i32, %arg3: memref<8x128xf32, #tpu.memory_space<vmem>>, %arg4: memref<128x128xf32, #tpu.memory_space<vmem>>, %arg5: memref<1x128xf32, #tpu.memory_space<vmem>>, %arg6: memref<8x128xf32, #tpu.memory_space<vmem>>, %arg7: memref<8x128xf32, #tpu.memory_space<vmem>>) attributes {dimension_semantics = [#tpu.dimension_semantics<parallel>, #tpu.dimension_semantics<parallel>, #tpu.dimension_semantics<arbitrary>], iteration_bounds = array<i64: 2, 1, 1>, scalar_prefetch = 0 : i64, scratch_operands = 1 : i64, tpu.core_type = #tpu.core_type<tc>, window_params = [{transform_indices = @transform_0, window_bounds = array<i64: 8, 128>}, {transform_indices = @transform_1, window_bounds = array<i64: 128, 128>}, {transform_indices = @transform_2, window_bounds = array<i64: 1, 128>}, {transform_indices = @transform_3, window_bounds = array<i64: 8, 128>}]} {
    %c0_i32 = arith.constant 0 : i32
    %0 = arith.cmpi eq, %arg2, %c0_i32 : i32
    %1 = arith.extui %0 : i1 to i32
    %c0_i32_0 = arith.constant 0 : i32
    %2 = arith.cmpi ne, %1, %c0_i32_0 : i32
    scf.if %2 {
      %c0_10 = arith.constant 0 : index
      %c0_11 = arith.constant 0 : index
      %12 = vector.load %arg5[%c0_10, %c0_11] : memref<1x128xf32, #tpu.memory_space<vmem>>, vector<1x128xf32>
      %13 = vector.shape_cast %12 : vector<1x128xf32> to vector<1x128xf32>
      %14 = vector.broadcast %13 : vector<1x128xf32> to vector<8x128xf32>
      %c0_12 = arith.constant 0 : index
      %c0_13 = arith.constant 0 : index
      %15 = vector.load %arg7[%c0_12, %c0_13] : memref<8x128xf32, #tpu.memory_space<vmem>>, vector<8x128xf32>
      tpu.vector_store %arg7[%c0_12, %c0_13], %14 {strides = array<i32>} : memref<8x128xf32, #tpu.memory_space<vmem>>, vector<8x128xf32>,
    } else {
    }
    %c0 = arith.constant 0 : index
    %c0_1 = arith.constant 0 : index
    %3 = vector.load %arg7[%c0, %c0_1] : memref<8x128xf32, #tpu.memory_space<vmem>>, vector<8x128xf32>
    %c0_2 = arith.constant 0 : index
    %c0_3 = arith.constant 0 : index
    %4 = vector.load %arg3[%c0_2, %c0_3] : memref<8x128xf32, #tpu.memory_space<vmem>>, vector<8x128xf32>
    %c0_4 = arith.constant 0 : index
    %c0_5 = arith.constant 0 : index
    %5 = vector.load %arg4[%c0_4, %c0_5] : memref<128x128xf32, #tpu.memory_space<vmem>>, vector<128x128xf32>
    %cst = arith.constant dense<0.000000e+00> : vector<8x128xf32>
    %6 = tpu.matmul %4, %5, %cst {dimension_numbers = #tpu.dot_dimension_numbers<[1], [0], [0], [1], [0, 0, 1, 1], [], []>, precision = #tpu.contract_precision<fp32>} : vector<8x128xf32>, vector<128x128xf32>, vector<8x128xf32> -> vector<8x128xf32>
    %7 = arith.addf %3, %6 : vector<8x128xf32>
    %c0_6 = arith.constant 0 : index
    %c0_7 = arith.constant 0 : index
    %8 = vector.load %arg7[%c0_6, %c0_7] : memref<8x128xf32, #tpu.memory_space<vmem>>, vector<8x128xf32>
    tpu.vector_store %arg7[%c0_6, %c0_7], %7 {strides = array<i32>} : memref<8x128xf32, #tpu.memory_space<vmem>>, vector<8x128xf32>,
    %c0_i32_8 = arith.constant 0 : i32
    %9 = arith.cmpi eq, %arg2, %c0_i32_8 : i32
    %10 = arith.extui %9 : i1 to i32
    %c0_i32_9 = arith.constant 0 : i32
    %11 = arith.cmpi ne, %10, %c0_i32_9 : i32
    scf.if %11 {
      %c0_10 = arith.constant 0 : index
      %c0_11 = arith.constant 0 : index
      %12 = vector.load %arg7[%c0_10, %c0_11] : memref<8x128xf32, #tpu.memory_space<vmem>>, vector<8x128xf32>
      %cst_12 = arith.constant 5.000000e-01 : f32
      %13 = vector.broadcast %cst_12 : f32 to vector<8x128xf32>
      %14 = arith.mulf %13, %12 : vector<8x128xf32>
      %cst_13 = arith.constant 0.707106769 : f32
      %15 = vector.broadcast %cst_13 : f32 to vector<8x128xf32>
      %16 = arith.mulf %12, %15 : vector<8x128xf32>
      %17 = math.erf %16 : vector<8x128xf32>
      %cst_14 = arith.constant 1.000000e+00 : f32
      %18 = vector.broadcast %cst_14 : f32 to vector<8x128xf32>
      %19 = arith.addf %18, %17 : vector<8x128xf32>
      %20 = arith.mulf %14, %19 : vector<8x128xf32>
      %c0_15 = arith.constant 0 : index
      %c0_16 = arith.constant 0 : index
      %21 = vector.load %arg6[%c0_15, %c0_16] : memref<8x128xf32, #tpu.memory_space<vmem>>, vector<8x128xf32>
      tpu.vector_store %arg6[%c0_15, %c0_16], %20 {strides = array<i32>} : memref<8x128xf32, #tpu.memory_space<vmem>>, vector<8x128xf32>,
    } else {
    }
    return
  }
  func.func @transform_0(%arg0: i32, %arg1: i32, %arg2: i32) -> (i32, i32) {
    %c0_i32 = arith.constant 0 : i32
    return %arg0, %arg2 : i32, i32
  }
  func.func @transform_1(%arg0: i32, %arg1: i32, %arg2: i32) -> (i32, i32) {
    %c0_i32 = arith.constant 0 : i32
    return %arg2, %arg1 : i32, i32
  }
  func.func @transform_2(%arg0: i32, %arg1: i32, %arg2: i32) -> (i32, i32) {
    %c0_i32 = arith.constant 0 : i32
    %c0_i32_0 = arith.constant 0 : i32
    return %c0_i32, %arg1 : i32, i32
  }
  func.func @transform_3(%arg0: i32, %arg1: i32, %arg2: i32) -> (i32, i32) {
    %c0_i32 = arith.constant 0 : i32
    return %arg0, %arg1 : i32, i32
  }
}

</mosaic_0001>

<llo_original>
// kernel: tpu_custom_call.1
$region0: #{tpu_custom_call.1}
  #allocation0 [shape = 'u32[]', space=smem, size = 0x4, offset = 0x4, fixed_abs, tag = 'smem constant byte address 0x4 - core index']
  #allocation1 [shape = 'u32[144,128]{1,0:T(1,128)}', space=vmem, size = 0x12000, scoped, tag = 'internal scratch']
  #allocation2 [shape = 'f32[8,128]{1,0:T(8,128)}', space=vmem, size = 0x1000, scoped, tag = 'scratch operand']
  %s0 = inlined_call_operand.hbm [shape: f32[16,128], index: 0, kind: input, shape index: {}]
  %s1 = inlined_call_operand.hbm [shape: f32[128,128], index: 1, kind: input, shape index: {}]
  %s2 = inlined_call_operand.vmem [shape: f32[1,128], index: 2, kind: input, shape index: {}]
  %s3 = inlined_call_operand.hbm [shape: f32[16,128], index: 3, kind: output, shape index: {}]
  %s4 = sld [smem:[#allocation0]]
  $region61: #{tpu_custom_call.1} parent=0
    _
  %s6 = ssub.s32 1, %s4
  %s7 = scalar_select 0, %s6, %s4
  $region1: #{tpu_custom_call.1} parent=0
    #allocation3 [shape = 'u8[8192]{0}', space=vmem, size = 0x2000, scoped, tag = 'input window, operand 0']
    #allocation4 [shape = 's32[2]{0}', space=sflag, size = 0x8, scoped, tag = 'scoped memory for tpu_custom_call.1']
    #allocation5 [shape = 's32[2]{0}', space=sflag, size = 0x8, scoped, tag = 'scoped memory for tpu_custom_call.1']
    #allocation6 [shape = 'u8[65536]{0}', space=vmem, size = 0x10000, scoped, tag = 'input window, operand 1, single buffered']
    #allocation7 [shape = 's32[1]{0}', space=sflag, size = 0x4, scoped, tag = 'scoped memory for tpu_custom_call.1']
    #allocation8 [shape = 'u8[8192]{0}', space=vmem, size = 0x2000, scoped, tag = 'output window, operand 0']
    %8 = vsyncpa [#allocation4], 0
    %s9 = scalar_lea.sflag [#allocation4], 1
    %10 = vsyncpa %s9, 0
    %11 = vsyncpa [#allocation7], 0
    %12 = vsyncpa [#allocation5], 0
    %s13 = scalar_lea.sflag [#allocation5], 1
    %14 = vsyncpa %s13, 0
    loop: start=0, step=1, limit=4
    $region2: #{tpu_custom_call.1} parent=1 // loop_pre_header
      _
    $region3: #{tpu_custom_call.1} parent=1 // loop_header
      %s16 = sphi 0, %s20
      %p17 = scmp.ge.s32.totalorder %s16, 4
      %s23 = sphi 0, %s42
      %s24 = sphi 0, %s38
      %s25 = sphi 0, %s34
      %s26 = sphi 0, %s23
      %s27 = sphi 0, %s24
      %s28 = sphi 0, %s25
      %s29 = sphi 0, %s26
      %s30 = sphi 0, %s27
      %s31 = sphi 0, %s28
      %s47 = sphi 0, %s49
      %s50 = sphi 0, %s47
      %s51 = sphi 0, %s50
      %s67 = sphi 0, %s51
      %s75 = sphi 0, %s77
      %s78 = sphi 0, %s75
      %s79 = sphi 0, %s78
      %s95 = sphi 0, %s79
      %s101 = sphi 0, %s103
      %s104 = sphi 0, %s101
      %s105 = sphi 0, %s104
      %s121 = sphi 0, %s105
      %s129 = sphi 0, %s131
      %s132 = sphi 0, %s129
      %s133 = sphi 0, %s132
      %s149 = sphi 0, %s133
    $region4: #{tpu_custom_call.1} parent=1 // loop_header_branch
      %19 = sbr.rel (%p17) target = $region8
    $region5: #{tpu_custom_call.1} parent=1 // loop_body
      %s21 = ssub.s32 %s16, 1
      %s22 = ssub.s32 %s16, 2
      %s32 = sadd.s32 1, %s25
      %p33 = scmp.ge.s32.totalorder %s32, 1
      %s34 = scalar_select %p33, 0, %s32
      %s35 = sadd.s32 1, %s24
      %s36 = scalar_select %p33, %s35, %s24
      %p37 = scmp.ge.s32.totalorder %s36, 1
      %s38 = scalar_select %p37, 0, %s36
      %s39 = sadd.s32 1, %s23
      %s40 = scalar_select %p37, %s39, %s23
      %p41 = scmp.ge.s32.totalorder %s40, 2
      %s42 = scalar_select %p41, 0, %s40
      %s43 = ssub.s32 %s23, %s42
      %s44 = ssub.s32 %s25, %s34
      %s45 = sor.u32 %s43, %s44
      %p46 = scmp.eq.s32.totalorder %s45, 0
      %s48 = sadd.s32 %s47, 1
      %s49 = scalar_select %p46, %s47, %s48
      %p52 = pneg %p46
      %p53 = scmp.eq.s32.totalorder %s16, 1
      %p54 = por %p52, %p53
      %p55 = scmp.ne.s32.totalorder %s47, %s50
      %p56 = scmp.eq.s32.totalorder %s16, 0
      %p57 = por %p55, %p56
      %p58 = scmp.ne.s32.totalorder %s47, %s50
      %p59 = scmp.eq.s32.totalorder %s21, 1
      %p60 = por %p58, %p59
      %p61 = scmp.ne.s32.totalorder %s50, %s51
      %p62 = scmp.eq.s32.totalorder %s21, 0
      %p63 = por %p61, %p62
      %p64 = scmp.ne.s32.totalorder %s50, %s51
      %p65 = scmp.eq.s32.totalorder %s22, 1
      %p66 = por %p64, %p65
      %p68 = scmp.ne.s32.totalorder %s51, %s67
      %p69 = scmp.eq.s32.totalorder %s22, 0
      %p70 = por %p68, %p69
      %s71 = ssub.s32 %s25, %s34
      %s72 = ssub.s32 %s24, %s38
      %s73 = sor.u32 %s71, %s72
      %p74 = scmp.eq.s32.totalorder %s73, 0
      %s76 = sadd.s32 %s75, 1
      %s77 = scalar_select %p74, %s75, %s76
      %p80 = pneg %p74
      %p81 = scmp.eq.s32.totalorder %s16, 1
      %p82 = por %p80, %p81
      %p83 = scmp.ne.s32.totalorder %s75, %s78
      %p84 = scmp.eq.s32.totalorder %s16, 0
      %p85 = por %p83, %p84
      %p86 = scmp.ne.s32.totalorder %s75, %s78
      %p87 = scmp.eq.s32.totalorder %s21, 1
      %p88 = por %p86, %p87
      %p89 = scmp.ne.s32.totalorder %s78, %s79
      %p90 = scmp.eq.s32.totalorder %s21, 0
      %p91 = por %p89, %p90
      %p92 = scmp.ne.s32.totalorder %s78, %s79
      %p93 = scmp.eq.s32.totalorder %s22, 1
      %p94 = por %p92, %p93
      %p96 = scmp.ne.s32.totalorder %s79, %s95
      %p97 = scmp.eq.s32.totalorder %s22, 0
      %p98 = por %p96, %p97
      %s99 = ssub.s32 %s24, %s38
      %p100 = scmp.eq.s32.totalorder %s99, 0
      %s102 = sadd.s32 %s101, 1
      %s103 = scalar_select %p100, %s101, %s102
      %p106 = pneg %p100
      %p107 = scmp.eq.s32.totalorder %s16, 1
      %p108 = por %p106, %p107
      %p109 = scmp.ne.s32.totalorder %s101, %s104
      %p110 = scmp.eq.s32.totalorder %s16, 0
      %p111 = por %p109, %p110
      %p112 = scmp.ne.s32.totalorder %s101, %s104
      %p113 = scmp.eq.s32.totalorder %s21, 1
      %p114 = por %p112, %p113
      %p115 = scmp.ne.s32.totalorder %s104, %s105
      %p116 = scmp.eq.s32.totalorder %s21, 0
      %p117 = por %p115, %p116
      %p118 = scmp.ne.s32.totalorder %s104, %s105
      %p119 = scmp.eq.s32.totalorder %s22, 1
      %p120 = por %p118, %p119
      %p122 = scmp.ne.s32.totalorder %s105, %s121
      %p123 = scmp.eq.s32.totalorder %s22, 0
      %p124 = por %p122, %p123
      %s125 = ssub.s32 %s23, %s42
      %s126 = ssub.s32 %s24, %s38
      %s127 = sor.u32 %s125, %s126
      %p128 = scmp.eq.s32.totalorder %s127, 0
      %s130 = sadd.s32 %s129, 1
      %s131 = scalar_select %p128, %s129, %s130
      %p134 = pneg %p128
      %p135 = scmp.eq.s32.totalorder %s16, 1
      %p136 = por %p134, %p135
      %p137 = scmp.ne.s32.totalorder %s129, %s132
      %p138 = scmp.eq.s32.totalorder %s16, 0
      %p139 = por %p137, %p138
      %p140 = scmp.ne.s32.totalorder %s129, %s132
      %p141 = scmp.eq.s32.totalorder %s21, 1
      %p142 = por %p140, %p141
      %p143 = scmp.ne.s32.totalorder %s132, %s133
      %p144 = scmp.eq.s32.totalorder %s21, 0
      %p145 = por %p143, %p144
      %p146 = scmp.ne.s32.totalorder %s132, %s133
      %p147 = scmp.eq.s32.totalorder %s22, 1
      %p148 = por %p146, %p147
      %p150 = scmp.ne.s32.totalorder %s133, %s149
      %p151 = scmp.eq.s32.totalorder %s22, 0
      %p152 = por %p150, %p151
      %p153 = scmp.le.s32.totalorder 1, %s16
      %p154 = scmp.lt.s32.totalorder %s16, 3
      %p155 = pnand %p153, %p154
      %p156 = pneg %p155
      // Predicated region
      $region9: #{tpu_custom_call.1} parent=5 // pred_check
        _
      $region10: #{tpu_custom_call.1} parent=5 // pred_check_branch
        %158 = sbr.rel (%p155) target = $region12
      $region11: #{tpu_custom_call.1} parent=5 // pred_region
        %s159 = ssub.s32 %s16, 1
        // Predicated region
        $region13: #{tpu_custom_call.1} parent=11 // pred_check
          %p160 = pneg %p91
        $region14: #{tpu_custom_call.1} parent=11 // pred_check_branch
          %162 = sbr.rel (%p160) target = $region16
        $region15: #{tpu_custom_call.1} parent=11 // pred_region
          %s163 = smul.u32 16, %s28
          %s165 = ssub.s32 2048, 2048
          %166 = vsyncadd [#allocation7], %s165
          %s167 = sadd.s32 %s27, %s163
          %s168 = smul.addr %s167, 128
          %s169 = scalar_lea.hbm %s1, %s168
          %s170 = sshll.u32 [#allocation6], 4
          %s171 = int_to_ptr.vmem [resolvable:$true] %s170
          %176 = dma.hbm_to_vmem [thread:$0]  %s169, 2048, %s171, [#allocation7], 128, 128, 8
        $region16: #{tpu_custom_call.1} parent=11 // pred_fallthru
          _
        // Predicated region
        $region17: #{tpu_custom_call.1} parent=11 // pred_check
          %p177 = pneg %p117
        $region18: #{tpu_custom_call.1} parent=11 // pred_check_branch
          %179 = sbr.rel (%p177) target = $region20
        $region19: #{tpu_custom_call.1} parent=11 // pred_region
          %p180 = scmp.lt.s32.totalorder %s27, 0
          %s181 = scalar_select %p180, %s27, 0
          %s182 = scalar_lea.vmem %s2, %s181
        $region20: #{tpu_custom_call.1} parent=11 // pred_fallthru
          _
      $region12: #{tpu_custom_call.1} parent=5 // pred_fallthru
        _
      %p183 = scmp.lt.s32.totalorder %s16, 2
      // Predicated region
      $region21: #{tpu_custom_call.1} parent=5 // pred_check
        %p184 = pneg %p183
      $region22: #{tpu_custom_call.1} parent=5 // pred_check_branch
        %186 = sbr.rel (%p184) target = $region24
      $region23: #{tpu_custom_call.1} parent=5 // pred_region
        // Predicated region
        $region25: #{tpu_custom_call.1} parent=23 // pred_check
          %p187 = pneg %p57
        $region26: #{tpu_custom_call.1} parent=23 // pred_check_branch
          %189 = sbr.rel (%p187) target = $region28
        $region27: #{tpu_custom_call.1} parent=23 // pred_region
          %s190 = sand.u32 %s47, 1
          %s191 = scalar_lea.sflag [#allocation4], %s190
          %s192 = sand.u32 %s47, 1
          %s193 = smul.addr %s192, 8
          %s194 = scalar_lea.vmem [#allocation3], %s193
          %s196 = ssub.s32 128, 128
          %197 = vsyncadd %s191, %s196
          %s198 = sadd.s32 %s25, %s23
          %s199 = smul.addr %s198, 128
          %s200 = scalar_lea.hbm %s0, %s199
          %s202 = sshll.u32 %s194, 4
          %s203 = int_to_ptr.vmem [resolvable:$true] %s202
          %205 = dma.hbm_to_vmem [thread:$0]  %s200, 128, %s203, %s191
        $region28: #{tpu_custom_call.1} parent=23 // pred_fallthru
          _
      $region24: #{tpu_custom_call.1} parent=5 // pred_fallthru
        _
      %p206 = scmp.le.s32.totalorder 1, %s16
      %p207 = scmp.lt.s32.totalorder %s16, 3
      %p208 = pnand %p206, %p207
      %p209 = pneg %p208
      // Predicated region
      $region29: #{tpu_custom_call.1} parent=5 // pred_check
        _
      $region30: #{tpu_custom_call.1} parent=5 // pred_check_branch
        %211 = sbr.rel (%p208) target = $region32
      $region31: #{tpu_custom_call.1} parent=5 // pred_region
        %s212 = ssub.s32 %s16, 1
        %s213 = sand.u32 %s50, 1
        %s214 = scalar_lea.sflag [#allocation4], %s213
        %s215 = sand.u32 %s50, 1
        %s216 = smul.addr %s215, 8
        %s217 = scalar_lea.vmem [#allocation3], %s216
        // Predicated region
        $region33: #{tpu_custom_call.1} parent=31 // pred_check
          %p218 = pneg %p63
        $region34: #{tpu_custom_call.1} parent=31 // pred_check_branch
          %220 = sbr.rel (%p218) target = $region36
        $region35: #{tpu_custom_call.1} parent=31 // pred_region
          %221 = dma.done %s214, 128
        $region36: #{tpu_custom_call.1} parent=31 // pred_fallthru
          _
        // Predicated region
        $region37: #{tpu_custom_call.1} parent=31 // pred_check
          %p222 = pneg %p91
        $region38: #{tpu_custom_call.1} parent=31 // pred_check_branch
          %224 = sbr.rel (%p222) target = $region40
        $region39: #{tpu_custom_call.1} parent=31 // pred_region
          %225 = dma.done [#allocation7], 2048
        $region40: #{tpu_custom_call.1} parent=31 // pred_fallthru
          _
        %s226 = sand.u32 %s50, 1
        %s227 = scalar_lea.sflag [#allocation4], %s226
        %s228 = sand.u32 %s50, 1
        %s229 = smul.addr %s228, 8
        %s230 = scalar_lea.vmem [#allocation3], %s229
        %p231 = pneg %p63
        %p232 = pneg %p60
        %p233 = pneg %p91
        %p234 = pneg %p88
        %p235 = scmp.lt.s32.totalorder %s27, 0
        %s236 = scalar_select %p235, %s27, 0
        %s237 = scalar_lea.vmem %s2, %s236
        %p238 = pneg %p117
        %p239 = pneg %p114
        %p240 = pneg %p145
        %p241 = pneg %p142
        %s242 = sand.u32 %s132, 1
        %s243 = scalar_lea.sflag [#allocation5], %s242
        %s244 = sand.u32 %s132, 1
        %s245 = smul.addr %s244, 8
        %s246 = scalar_lea.vmem [#allocation8], %s245
        %s247 = smul.u32 16, %s28
        %p248 = scmp.lt.s32.totalorder %s27, 0
        %s249 = scalar_select %p248, %s27, 0
        %s250 = scalar_lea.vmem %s2, %s249
        %p251 = scmp.eq.s32.totalorder %s28, 0
        // Predicated region
        $region41: #{tpu_custom_call.1} parent=31 // pred_check
          %p252 = pneg %p251
        $region42: #{tpu_custom_call.1} parent=31 // pred_check_branch
          %254 = sbr.rel (%p252) target = $region44
        $region43: #{tpu_custom_call.1} parent=31 // pred_region
          %v255 = vld [vmem:[%s250] sm:$0x1]
          %v257 = vlaneseq
          %v258 = vshrl.u32 %v257, 7
          %v259 = vsub.s32 0, %v258
          %v260 = vrot.slane %v255, %v259
          %262 = vst [vmem:[#allocation2] sm:$0xff] %v260
        $region44: #{tpu_custom_call.1} parent=31 // pred_fallthru
          _
        %v263 = vld [vmem:[#allocation2] sm:$0xff]
        %v264 = vld [vmem:[%s217] sm:$0xff]
        %v265 = vld [vmem:[#allocation6] sm:$0xff]
        %v266 = vld [vmem:[#allocation6 + $0x8] sm:$0xff]
        %v267 = vld [vmem:[#allocation6 + $0x10] sm:$0xff]
        %v268 = vld [vmem:[#allocation6 + $0x18] sm:$0xff]
        %v269 = vld [vmem:[#allocation6 + $0x20] sm:$0xff]
        %v270 = vld [vmem:[#allocation6 + $0x28] sm:$0xff]
        %v271 = vld [vmem:[#allocation6 + $0x30] sm:$0xff]
        %v272 = vld [vmem:[#allocation6 + $0x38] sm:$0xff]
        %v273 = vld [vmem:[#allocation6 + $0x40] sm:$0xff]
        %v274 = vld [vmem:[#allocation6 + $0x48] sm:$0xff]
        %v275 = vld [vmem:[#allocation6 + $0x50] sm:$0xff]
        %v276 = vld [vmem:[#allocation6 + $0x58] sm:$0xff]
        %v277 = vld [vmem:[#allocation6 + $0x60] sm:$0xff]
        %v278 = vld [vmem:[#allocation6 + $0x68] sm:$0xff]
        %v279 = vld [vmem:[#allocation6 + $0x70] sm:$0xff]
        %v280 = vld [vmem:[#allocation6 + $0x78] sm:$0xff]
        %281 = vmatprep.subr.mxu0 0.0
        %v282 = vand.u32 %v265, 4294901760
        %283 = vmatpush1.msra.mxu0 %v282
        %284 = vmatprep.subr.mxu0 0.0
        %v285 = vand.u32 %v266, 4294901760
        %286 = vmatpush1.msra.mxu0 %v285
        %287 = vmatprep.subr.mxu0 0.0
        %v288 = vand.u32 %v267, 4294901760
        %289 = vmatpush1.msra.mxu0 %v288
        %290 = vmatprep.subr.mxu0 0.0
        %v291 = vand.u32 %v268, 4294901760
        %292 = vmatpush1.msra.mxu0 %v291
        %293 = vmatprep.subr.mxu0 0.0
        %v294 = vand.u32 %v269, 4294901760
        %295 = vmatpush1.msra.mxu0 %v294
        %296 = vmatprep.subr.mxu0 0.0
        %v297 = vand.u32 %v270, 4294901760
        %298 = vmatpush1.msra.mxu0 %v297
        %299 = vmatprep.subr.mxu0 0.0
        %v300 = vand.u32 %v271, 4294901760
        %301 = vmatpush1.msra.mxu0 %v300
        %302 = vmatprep.subr.mxu0 0.0
        %v303 = vand.u32 %v272, 4294901760
        %304 = vmatpush1.msra.mxu0 %v303
        %305 = vmatprep.subr.mxu0 0.0
        %v306 = vand.u32 %v273, 4294901760
        %307 = vmatpush1.msra.mxu0 %v306
        %308 = vmatprep.subr.mxu0 0.0
        %v309 = vand.u32 %v274, 4294901760
        %310 = vmatpush1.msra.mxu0 %v309
        %311 = vmatprep.subr.mxu0 0.0
        %v312 = vand.u32 %v275, 4294901760
        %313 = vmatpush1.msra.mxu0 %v312
        %314 = vmatprep.subr.mxu0 0.0
        %v315 = vand.u32 %v276, 4294901760
        %316 = vmatpush1.msra.mxu0 %v315
        %317 = vmatprep.subr.mxu0 0.0
        %v318 = vand.u32 %v277, 4294901760
        %319 = vmatpush1.msra.mxu0 %v318
        %320 = vmatprep.subr.mxu0 0.0
        %v321 = vand.u32 %v278, 4294901760
        %322 = vmatpush1.msra.mxu0 %v321
        %323 = vmatprep.subr.mxu0 0.0
        %v324 = vand.u32 %v279, 4294901760
        %325 = vmatpush1.msra.mxu0 %v324
        %326 = vmatprep.subr.mxu0 0.0
        %v327 = vand.u32 %v280, 4294901760
        %328 = vmatpush1.msra.mxu0 %v327
        %329 = vmatprep.subr.mxu0 0.0
        %330 = vmatpush1.msra.mxu0 0.0
        %331 = vmatprep.subr.mxu0 0.0
        %332 = vmatpush1.msra.mxu0 0.0
        %333 = vmatprep.subr.mxu0 0.0
        %334 = vmatpush1.msra.mxu0 0.0
        %335 = vmatprep.subr.mxu0 0.0
        %336 = vmatpush1.msra.mxu0 0.0
        %337 = vmatprep.subr.mxu0 0.0
        %338 = vmatpush1.msra.mxu0 0.0
        %339 = vmatprep.subr.mxu0 0.0
        %340 = vmatpush1.msra.mxu0 0.0
        %341 = vmatprep.subr.mxu0 0.0
        %342 = vmatpush1.msra.mxu0 0.0
        %343 = vmatprep.subr.mxu0 0.0
        %344 = vmatpush1.msra.mxu0 0.0
        %345 = vmatprep.subr.mxu0 0.0
        %346 = vmatpush1.msra.mxu0 0.0
        %347 = vmatprep.subr.mxu0 0.0
        %348 = vmatpush1.msra.mxu0 0.0
        %349 = vmatprep.subr.mxu0 0.0
        %350 = vmatpush1.msra.mxu0 0.0
        %351 = vmatprep.subr.mxu0 0.0
        %352 = vmatpush1.msra.mxu0 0.0
        %353 = vmatprep.subr.mxu0 0.0
        %354 = vmatpush1.msra.mxu0 0.0
        %355 = vmatprep.subr.mxu0 0.0
        %356 = vmatpush1.msra.mxu0 0.0
        %357 = vmatprep.subr.mxu0 0.0
        %358 = vmatpush1.msra.mxu0 0.0
        %359 = vmatprep.subr.mxu0 0.0
        %360 = vmatpush1.msra.mxu0 0.0
        %361 = vmatprep.mubr.f32.mxu0 0.0
        %v362 = vand.u32 %v264, 4294901760
        %v363 = vsub.f32 %v264, %v362
        %v364 = vand.u32 %v363, 4294901760
        %v365 = vsub.f32 %v363, %v364
        %v366 = vand.u32 %v365, 4294901760
        %367 = vmatmul.mubr.f32.gmra.mrb[0].mxu0 %v366
        %v368 = vpop.f32.mrb[0].mxu0
        %v369 = vadd.f32 0.0, %v368
        %v370 = vpop.f32.mrb[0].mxu0
        %371 = vdwg.mxu0
        %372 = vmatprep.subr.mxu0 0.0
        %v373 = vand.u32 %v265, 4294901760
        %v374 = vsub.f32 %v265, %v373
        %v375 = vand.u32 %v374, 4294901760
        %v376 = vsub.f32 %v374, %v375
        %v377 = vand.u32 %v376, 4294901760
        %378 = vmatpush1.msra.mxu0 %v377
        %379 = vmatprep.subr.mxu0 0.0
        %v380 = vand.u32 %v266, 4294901760
        %v381 = vsub.f32 %v266, %v380
        %v382 = vand.u32 %v381, 4294901760
        %v383 = vsub.f32 %v381, %v382
        %v384 = vand.u32 %v383, 4294901760
        %385 = vmatpush1.msra.mxu0 %v384
        %386 = vmatprep.subr.mxu0 0.0
        %v387 = vand.u32 %v267, 4294901760
        %v388 = vsub.f32 %v267, %v387
        %v389 = vand.u32 %v388, 4294901760
        %v390 = vsub.f32 %v388, %v389
        %v391 = vand.u32 %v390, 4294901760
        %392 = vmatpush1.msra.mxu0 %v391
        %393 = vmatprep.subr.mxu0 0.0
        %v394 = vand.u32 %v268, 4294901760
        %v395 = vsub.f32 %v268, %v394
        %v396 = vand.u32 %v395, 4294901760
        %v397 = vsub.f32 %v395, %v396
        %v398 = vand.u32 %v397, 4294901760
        %399 = vmatpush1.msra.mxu0 %v398
        %400 = vmatprep.subr.mxu0 0.0
        %v401 = vand.u32 %v269, 4294901760
        %v402 = vsub.f32 %v269, %v401
        %v403 = vand.u32 %v402, 4294901760
        %v404 = vsub.f32 %v402, %v403
        %v405 = vand.u32 %v404, 4294901760
        %406 = vmatpush1.msra.mxu0 %v405
        %407 = vmatprep.subr.mxu0 0.0
        %v408 = vand.u32 %v270, 4294901760
        %v409 = vsub.f32 %v270, %v408
        %v410 = vand.u32 %v409, 4294901760
        %v411 = vsub.f32 %v409, %v410
        %v412 = vand.u32 %v411, 4294901760
        %413 = vmatpush1.msra.mxu0 %v412
        %414 = vmatprep.subr.mxu0 0.0
        %v415 = vand.u32 %v271, 4294901760
        %v416 = vsub.f32 %v271, %v415
        %v417 = vand.u32 %v416, 4294901760
        %v418 = vsub.f32 %v416, %v417
        %v419 = vand.u32 %v418, 4294901760
        %420 = vmatpush1.msra.mxu0 %v419
        %421 = vmatprep.subr.mxu0 0.0
        %v422 = vand.u32 %v272, 4294901760
        %v423 = vsub.f32 %v272, %v422
        %v424 = vand.u32 %v423, 4294901760
        %v425 = vsub.f32 %v423, %v424
        %v426 = vand.u32 %v425, 4294901760
        %427 = vmatpush1.msra.mxu0 %v426
        %428 = vmatprep.subr.mxu0 0.0
        %v429 = vand.u32 %v273, 4294901760
        %v430 = vsub.f32 %v273, %v429
        %v431 = vand.u32 %v430, 4294901760
        %v432 = vsub.f32 %v430, %v431
        %v433 = vand.u32 %v432, 4294901760
        %434 = vmatpush1.msra.mxu0 %v433
        %435 = vmatprep.subr.mxu0 0.0
        %v436 = vand.u32 %v274, 4294901760
        %v437 = vsub.f32 %v274, %v436
        %v438 = vand.u32 %v437, 4294901760
        %v439 = vsub.f32 %v437, %v438
        %v440 = vand.u32 %v439, 4294901760
        %441 = vmatpush1.msra.mxu0 %v440
        %442 = vmatprep.subr.mxu0 0.0
        %v443 = vand.u32 %v275, 4294901760
        %v444 = vsub.f32 %v275, %v443
        %v445 = vand.u32 %v444, 4294901760
        %v446 = vsub.f32 %v444, %v445
        %v447 = vand.u32 %v446, 4294901760
        %448 = vmatpush1.msra.mxu0 %v447
        %449 = vmatprep.subr.mxu0 0.0
        %v450 = vand.u32 %v276, 4294901760
        %v451 = vsub.f32 %v276, %v450
        %v452 = vand.u32 %v451, 4294901760
        %v453 = vsub.f32 %v451, %v452
        %v454 = vand.u32 %v453, 4294901760
        %455 = vmatpush1.msra.mxu0 %v454
        %456 = vmatprep.subr.mxu0 0.0
        %v457 = vand.u32 %v277, 4294901760
        %v458 = vsub.f32 %v277, %v457
        %v459 = vand.u32 %v458, 4294901760
        %v460 = vsub.f32 %v458, %v459
        %v461 = vand.u32 %v460, 4294901760
        %462 = vmatpush1.msra.mxu0 %v461
        %463 = vmatprep.subr.mxu0 0.0
        %v464 = vand.u32 %v278, 4294901760
        %v465 = vsub.f32 %v278, %v464
        %v466 = vand.u32 %v465, 4294901760
        %v467 = vsub.f32 %v465, %v466
        %v468 = vand.u32 %v467, 4294901760
        %469 = vmatpush1.msra.mxu0 %v468
        %470 = vmatprep.subr.mxu0 0.0
        %v471 = vand.u32 %v279, 4294901760
        %v472 = vsub.f32 %v279, %v471
        %v473 = vand.u32 %v472, 4294901760
        %v474 = vsub.f32 %v472, %v473
        %v475 = vand.u32 %v474, 4294901760
        %476 = vmatpush1.msra.mxu0 %v475
        %477 = vmatprep.subr.mxu0 0.0
        %v478 = vand.u32 %v280, 4294901760
        %v479 = vsub.f32 %v280, %v478
        %v480 = vand.u32 %v479, 4294901760
        %v481 = vsub.f32 %v479, %v480
        %v482 = vand.u32 %v481, 4294901760
        %483 = vmatpush1.msra.mxu0 %v482
        %484 = vmatprep.subr.mxu0 0.0
        %485 = vmatpush1.msra.mxu0 0.0
        %486 = vmatprep.subr.mxu0 0.0
        %487 = vmatpush1.msra.mxu0 0.0
        %488 = vmatprep.subr.mxu0 0.0
        %489 = vmatpush1.msra.mxu0 0.0
        %490 = vmatprep.subr.mxu0 0.0
        %491 = vmatpush1.msra.mxu0 0.0
        %492 = vmatprep.subr.mxu0 0.0
        %493 = vmatpush1.msra.mxu0 0.0
        %494 = vmatprep.subr.mxu0 0.0
        %495 = vmatpush1.msra.mxu0 0.0
        %496 = vmatprep.subr.mxu0 0.0
        %497 = vmatpush1.msra.mxu0 0.0
        %498 = vmatprep.subr.mxu0 0.0
        %499 = vmatpush1.msra.mxu0 0.0
        %500 = vmatprep.subr.mxu0 0.0
        %501 = vmatpush1.msra.mxu0 0.0
        %502 = vmatprep.subr.mxu0 0.0
        %503 = vmatpush1.msra.mxu0 0.0
        %504 = vmatprep.subr.mxu0 0.0
        %505 = vmatpush1.msra.mxu0 0.0
        %506 = vmatprep.subr.mxu0 0.0
        %507 = vmatpush1.msra.mxu0 0.0
        %508 = vmatprep.subr.mxu0 0.0
        %509 = vmatpush1.msra.mxu0 0.0
        %510 = vmatprep.subr.mxu0 0.0
        %511 = vmatpush1.msra.mxu0 0.0
        %512 = vmatprep.subr.mxu0 0.0
        %513 = vmatpush1.msra.mxu0 0.0
        %514 = vmatprep.subr.mxu0 0.0
        %515 = vmatpush1.msra.mxu0 0.0
        %516 = vmatprep.mubr.f32.mxu0 0.0
        %v517 = vand.u32 %v264, 4294901760
        %518 = vmatmul.mubr.f32.gmra.mrb[0].mxu0 %v517
        %v519 = vpop.f32.mrb[0].mxu0
        %v520 = vadd.f32 %v369, %v519
        %v521 = vpop.f32.mrb[0].mxu0
        %522 = vdwg.mxu0
        %523 = vmatprep.subr.mxu0 0.0
        %v524 = vand.u32 %v265, 4294901760
        %v525 = vsub.f32 %v265, %v524
        %526 = vmatpush1.msra.mxu0 %v525
        %527 = vmatprep.subr.mxu0 0.0
        %v528 = vand.u32 %v266, 4294901760
        %v529 = vsub.f32 %v266, %v528
        %530 = vmatpush1.msra.mxu0 %v529
        %531 = vmatprep.subr.mxu0 0.0
        %v532 = vand.u32 %v267, 4294901760
        %v533 = vsub.f32 %v267, %v532
        %534 = vmatpush1.msra.mxu0 %v533
        %535 = vmatprep.subr.mxu0 0.0
        %v536 = vand.u32 %v268, 4294901760
        %v537 = vsub.f32 %v268, %v536
        %538 = vmatpush1.msra.mxu0 %v537
        %539 = vmatprep.subr.mxu0 0.0
        %v540 = vand.u32 %v269, 4294901760
        %v541 = vsub.f32 %v269, %v540
        %542 = vmatpush1.msra.mxu0 %v541
        %543 = vmatprep.subr.mxu0 0.0
        %v544 = vand.u32 %v270, 4294901760
        %v545 = vsub.f32 %v270, %v544
        %546 = vmatpush1.msra.mxu0 %v545
        %547 = vmatprep.subr.mxu0 0.0
        %v548 = vand.u32 %v271, 4294901760
        %v549 = vsub.f32 %v271, %v548
        %550 = vmatpush1.msra.mxu0 %v549
        %551 = vmatprep.subr.mxu0 0.0
        %v552 = vand.u32 %v272, 4294901760
        %v553 = vsub.f32 %v272, %v552
        %554 = vmatpush1.msra.mxu0 %v553
        %555 = vmatprep.subr.mxu0 0.0
        %v556 = vand.u32 %v273, 4294901760
        %v557 = vsub.f32 %v273, %v556
        %558 = vmatpush1.msra.mxu0 %v557
        %559 = vmatprep.subr.mxu0 0.0
        %v560 = vand.u32 %v274, 4294901760
        %v561 = vsub.f32 %v274, %v560
        %562 = vmatpush1.msra.mxu0 %v561
        %563 = vmatprep.subr.mxu0 0.0
        %v564 = vand.u32 %v275, 4294901760
        %v565 = vsub.f32 %v275, %v564
        %566 = vmatpush1.msra.mxu0 %v565
        %567 = vmatprep.subr.mxu0 0.0
        %v568 = vand.u32 %v276, 4294901760
        %v569 = vsub.f32 %v276, %v568
        %570 = vmatpush1.msra.mxu0 %v569
        %571 = vmatprep.subr.mxu0 0.0
        %v572 = vand.u32 %v277, 4294901760
        %v573 = vsub.f32 %v277, %v572
        %574 = vmatpush1.msra.mxu0 %v573
        %575 = vmatprep.subr.mxu0 0.0
        %v576 = vand.u32 %v278, 4294901760
        %v577 = vsub.f32 %v278, %v576
        %578 = vmatpush1.msra.mxu0 %v577
        %579 = vmatprep.subr.mxu0 0.0
        %v580 = vand.u32 %v279, 4294901760
        %v581 = vsub.f32 %v279, %v580
        %582 = vmatpush1.msra.mxu0 %v581
        %583 = vmatprep.subr.mxu0 0.0
        %v584 = vand.u32 %v280, 4294901760
        %v585 = vsub.f32 %v280, %v584
        %586 = vmatpush1.msra.mxu0 %v585
        %587 = vmatprep.subr.mxu0 0.0
        %588 = vmatpush1.msra.mxu0 0.0
        %589 = vmatprep.subr.mxu0 0.0
        %590 = vmatpush1.msra.mxu0 0.0
        %591 = vmatprep.subr.mxu0 0.0
        %592 = vmatpush1.msra.mxu0 0.0
        %593 = vmatprep.subr.mxu0 0.0
        %594 = vmatpush1.msra.mxu0 0.0
        %595 = vmatprep.subr.mxu0 0.0
        %596 = vmatpush1.msra.mxu0 0.0
        %597 = vmatprep.subr.mxu0 0.0
        %598 = vmatpush1.msra.mxu0 0.0
        %599 = vmatprep.subr.mxu0 0.0
        %600 = vmatpush1.msra.mxu0 0.0
        %601 = vmatprep.subr.mxu0 0.0
        %602 = vmatpush1.msra.mxu0 0.0
        %603 = vmatprep.subr.mxu0 0.0
        %604 = vmatpush1.msra.mxu0 0.0
        %605 = vmatprep.subr.mxu0 0.0
        %606 = vmatpush1.msra.mxu0 0.0
        %607 = vmatprep.subr.mxu0 0.0
        %608 = vmatpush1.msra.mxu0 0.0
        %609 = vmatprep.subr.mxu0 0.0
        %610 = vmatpush1.msra.mxu0 0.0
        %611 = vmatprep.subr.mxu0 0.0
        %612 = vmatpush1.msra.mxu0 0.0
        %613 = vmatprep.subr.mxu0 0.0
        %614 = vmatpush1.msra.mxu0 0.0
        %615 = vmatprep.subr.mxu0 0.0
        %616 = vmatpush1.msra.mxu0 0.0
        %617 = vmatprep.subr.mxu0 0.0
        %618 = vmatpush1.msra.mxu0 0.0
        %619 = vmatprep.mubr.f32.mxu0 0.0
        %v620 = vand.u32 %v264, 4294901760
        %v621 = vsub.f32 %v264, %v620
        %622 = vmatmul.mubr.f32.gmra.mrb[0].mxu0 %v621
        %v623 = vpop.f32.mrb[0].mxu0
        %v624 = vadd.f32 %v520, %v623
        %v625 = vpop.f32.mrb[0].mxu0
        %626 = vdwg.mxu0
        %627 = vmatprep.subr.mxu0 0.0
        %v628 = vand.u32 %v265, 4294901760
        %629 = vmatpush1.msra.mxu0 %v628
        %630 = vmatprep.subr.mxu0 0.0
        %v631 = vand.u32 %v266, 4294901760
        %632 = vmatpush1.msra.mxu0 %v631
        %633 = vmatprep.subr.mxu0 0.0
        %v634 = vand.u32 %v267, 4294901760
        %635 = vmatpush1.msra.mxu0 %v634
        %636 = vmatprep.subr.mxu0 0.0
        %v637 = vand.u32 %v268, 4294901760
        %638 = vmatpush1.msra.mxu0 %v637
        %639 = vmatprep.subr.mxu0 0.0
        %v640 = vand.u32 %v269, 4294901760
        %641 = vmatpush1.msra.mxu0 %v640
        %642 = vmatprep.subr.mxu0 0.0
        %v643 = vand.u32 %v270, 4294901760
        %644 = vmatpush1.msra.mxu0 %v643
        %645 = vmatprep.subr.mxu0 0.0
        %v646 = vand.u32 %v271, 4294901760
        %647 = vmatpush1.msra.mxu0 %v646
        %648 = vmatprep.subr.mxu0 0.0
        %v649 = vand.u32 %v272, 4294901760
        %650 = vmatpush1.msra.mxu0 %v649
        %651 = vmatprep.subr.mxu0 0.0
        %v652 = vand.u32 %v273, 4294901760
        %653 = vmatpush1.msra.mxu0 %v652
        %654 = vmatprep.subr.mxu0 0.0
        %v655 = vand.u32 %v274, 4294901760
        %656 = vmatpush1.msra.mxu0 %v655
        %657 = vmatprep.subr.mxu0 0.0
        %v658 = vand.u32 %v275, 4294901760
        %659 = vmatpush1.msra.mxu0 %v658
        %660 = vmatprep.subr.mxu0 0.0
        %v661 = vand.u32 %v276, 4294901760
        %662 = vmatpush1.msra.mxu0 %v661
        %663 = vmatprep.subr.mxu0 0.0
        %v664 = vand.u32 %v277, 4294901760
        %665 = vmatpush1.msra.mxu0 %v664
        %666 = vmatprep.subr.mxu0 0.0
        %v667 = vand.u32 %v278, 4294901760
        %668 = vmatpush1.msra.mxu0 %v667
        %669 = vmatprep.subr.mxu0 0.0
        %v670 = vand.u32 %v279, 4294901760
        %671 = vmatpush1.msra.mxu0 %v670
        %672 = vmatprep.subr.mxu0 0.0
        %v673 = vand.u32 %v280, 4294901760
        %674 = vmatpush1.msra.mxu0 %v673
        %675 = vmatprep.subr.mxu0 0.0
        %676 = vmatpush1.msra.mxu0 0.0
        %677 = vmatprep.subr.mxu0 0.0
        %678 = vmatpush1.msra.mxu0 0.0
        %679 = vmatprep.subr.mxu0 0.0
        %680 = vmatpush1.msra.mxu0 0.0
        %681 = vmatprep.subr.mxu0 0.0
        %682 = vmatpush1.msra.mxu0 0.0
        %683 = vmatprep.subr.mxu0 0.0
        %684 = vmatpush1.msra.mxu0 0.0
        %685 = vmatprep.subr.mxu0 0.0
        %686 = vmatpush1.msra.mxu0 0.0
        %687 = vmatprep.subr.mxu0 0.0
        %688 = vmatpush1.msra.mxu0 0.0
        %689 = vmatprep.subr.mxu0 0.0
        %690 = vmatpush1.msra.mxu0 0.0
        %691 = vmatprep.subr.mxu0 0.0
        %692 = vmatpush1.msra.mxu0 0.0
        %693 = vmatprep.subr.mxu0 0.0
        %694 = vmatpush1.msra.mxu0 0.0
        %695 = vmatprep.subr.mxu0 0.0
        %696 = vmatpush1.msra.mxu0 0.0
        %697 = vmatprep.subr.mxu0 0.0
        %698 = vmatpush1.msra.mxu0 0.0
        %699 = vmatprep.subr.mxu0 0.0
        %700 = vmatpush1.msra.mxu0 0.0
        %701 = vmatprep.subr.mxu0 0.0
        %702 = vmatpush1.msra.mxu0 0.0
        %703 = vmatprep.subr.mxu0 0.0
        %704 = vmatpush1.msra.mxu0 0.0
        %705 = vmatprep.subr.mxu0 0.0
        %706 = vmatpush1.msra.mxu0 0.0
        %707 = vmatprep.mubr.f32.mxu0 0.0
        %v708 = vand.u32 %v264, 4294901760
        %v709 = vsub.f32 %v264, %v708
        %v710 = vand.u32 %v709, 4294901760
        %711 = vmatmul.mubr.f32.gmra.mrb[0].mxu0 %v710
        %v712 = vpop.f32.mrb[0].mxu0
        %v713 = vadd.f32 %v624, %v712
        %v714 = vpop.f32.mrb[0].mxu0
        %715 = vdwg.mxu0
        %716 = vmatprep.subr.mxu0 0.0
        %v717 = vand.u32 %v265, 4294901760
        %v718 = vsub.f32 %v265, %v717
        %v719 = vand.u32 %v718, 4294901760
        %720 = vmatpush1.msra.mxu0 %v719
        %721 = vmatprep.subr.mxu0 0.0
        %v722 = vand.u32 %v266, 4294901760
        %v723 = vsub.f32 %v266, %v722
        %v724 = vand.u32 %v723, 4294901760
        %725 = vmatpush1.msra.mxu0 %v724
        %726 = vmatprep.subr.mxu0 0.0
        %v727 = vand.u32 %v267, 4294901760
        %v728 = vsub.f32 %v267, %v727
        %v729 = vand.u32 %v728, 4294901760
        %730 = vmatpush1.msra.mxu0 %v729
        %731 = vmatprep.subr.mxu0 0.0
        %v732 = vand.u32 %v268, 4294901760
        %v733 = vsub.f32 %v268, %v732
        %v734 = vand.u32 %v733, 4294901760
        %735 = vmatpush1.msra.mxu0 %v734
        %736 = vmatprep.subr.mxu0 0.0
        %v737 = vand.u32 %v269, 4294901760
        %v738 = vsub.f32 %v269, %v737
        %v739 = vand.u32 %v738, 4294901760
        %740 = vmatpush1.msra.mxu0 %v739
        %741 = vmatprep.subr.mxu0 0.0
        %v742 = vand.u32 %v270, 4294901760
        %v743 = vsub.f32 %v270, %v742
        %v744 = vand.u32 %v743, 4294901760
        %745 = vmatpush1.msra.mxu0 %v744
        %746 = vmatprep.subr.mxu0 0.0
        %v747 = vand.u32 %v271, 4294901760
        %v748 = vsub.f32 %v271, %v747
        %v749 = vand.u32 %v748, 4294901760
        %750 = vmatpush1.msra.mxu0 %v749
        %751 = vmatprep.subr.mxu0 0.0
        %v752 = vand.u32 %v272, 4294901760
        %v753 = vsub.f32 %v272, %v752
        %v754 = vand.u32 %v753, 4294901760
        %755 = vmatpush1.msra.mxu0 %v754
        %756 = vmatprep.subr.mxu0 0.0
        %v757 = vand.u32 %v273, 4294901760
        %v758 = vsub.f32 %v273, %v757
        %v759 = vand.u32 %v758, 4294901760
        %760 = vmatpush1.msra.mxu0 %v759
        %761 = vmatprep.subr.mxu0 0.0
        %v762 = vand.u32 %v274, 4294901760
        %v763 = vsub.f32 %v274, %v762
        %v764 = vand.u32 %v763, 4294901760
        %765 = vmatpush1.msra.mxu0 %v764
        %766 = vmatprep.subr.mxu0 0.0
        %v767 = vand.u32 %v275, 4294901760
        %v768 = vsub.f32 %v275, %v767
        %v769 = vand.u32 %v768, 4294901760
        %770 = vmatpush1.msra.mxu0 %v769
        %771 = vmatprep.subr.mxu0 0.0
        %v772 = vand.u32 %v276, 4294901760
        %v773 = vsub.f32 %v276, %v772
        %v774 = vand.u32 %v773, 4294901760
        %775 = vmatpush1.msra.mxu0 %v774
        %776 = vmatprep.subr.mxu0 0.0
        %v777 = vand.u32 %v277, 4294901760
        %v778 = vsub.f32 %v277, %v777
        %v779 = vand.u32 %v778, 4294901760
        %780 = vmatpush1.msra.mxu0 %v779
        %781 = vmatprep.subr.mxu0 0.0
        %v782 = vand.u32 %v278, 4294901760
        %v783 = vsub.f32 %v278, %v782
        %v784 = vand.u32 %v783, 4294901760
        %785 = vmatpush1.msra.mxu0 %v784
        %786 = vmatprep.subr.mxu0 0.0
        %v787 = vand.u32 %v279, 4294901760
        %v788 = vsub.f32 %v279, %v787
        %v789 = vand.u32 %v788, 4294901760
        %790 = vmatpush1.msra.mxu0 %v789
        %791 = vmatprep.subr.mxu0 0.0
        %v792 = vand.u32 %v280, 4294901760
        %v793 = vsub.f32 %v280, %v792
        %v794 = vand.u32 %v793, 4294901760
        %795 = vmatpush1.msra.mxu0 %v794
        %796 = vmatprep.subr.mxu0 0.0
        %797 = vmatpush1.msra.mxu0 0.0
        %798 = vmatprep.subr.mxu0 0.0
        %799 = vmatpush1.msra.mxu0 0.0
        %800 = vmatprep.subr.mxu0 0.0
        %801 = vmatpush1.msra.mxu0 0.0
        %802 = vmatprep.subr.mxu0 0.0
        %803 = vmatpush1.msra.mxu0 0.0
        %804 = vmatprep.subr.mxu0 0.0
        %805 = vmatpush1.msra.mxu0 0.0
        %806 = vmatprep.subr.mxu0 0.0
        %807 = vmatpush1.msra.mxu0 0.0
        %808 = vmatprep.subr.mxu0 0.0
        %809 = vmatpush1.msra.mxu0 0.0
        %810 = vmatprep.subr.mxu0 0.0
        %811 = vmatpush1.msra.mxu0 0.0
        %812 = vmatprep.subr.mxu0 0.0
        %813 = vmatpush1.msra.mxu0 0.0
        %814 = vmatprep.subr.mxu0 0.0
        %815 = vmatpush1.msra.mxu0 0.0
        %816 = vmatprep.subr.mxu0 0.0
        %817 = vmatpush1.msra.mxu0 0.0
        %818 = vmatprep.subr.mxu0 0.0
        %819 = vmatpush1.msra.mxu0 0.0
        %820 = vmatprep.subr.mxu0 0.0
        %821 = vmatpush1.msra.mxu0 0.0
        %822 = vmatprep.subr.mxu0 0.0
        %823 = vmatpush1.msra.mxu0 0.0
        %824 = vmatprep.subr.mxu0 0.0
        %825 = vmatpush1.msra.mxu0 0.0
        %826 = vmatprep.subr.mxu0 0.0
        %827 = vmatpush1.msra.mxu0 0.0
        %828 = vmatprep.mubr.f32.mxu0 0.0
        %v829 = vand.u32 %v264, 4294901760
        %830 = vmatmul.mubr.f32.gmra.mrb[0].mxu0 %v829
        %v831 = vpop.f32.mrb[0].mxu0
        %v832 = vadd.f32 %v713, %v831
        %v833 = vpop.f32.mrb[0].mxu0
        %834 = vdwg.mxu0
        %835 = vmatprep.subr.mxu0 0.0
        %v836 = vand.u32 %v265, 4294901760
        %837 = vmatpush1.msra.mxu0 %v836
        %838 = vmatprep.subr.mxu0 0.0
        %v839 = vand.u32 %v266, 4294901760
        %840 = vmatpush1.msra.mxu0 %v839
        %841 = vmatprep.subr.mxu0 0.0
        %v842 = vand.u32 %v267, 4294901760
        %843 = vmatpush1.msra.mxu0 %v842
        %844 = vmatprep.subr.mxu0 0.0
        %v845 = vand.u32 %v268, 4294901760
        %846 = vmatpush1.msra.mxu0 %v845
        %847 = vmatprep.subr.mxu0 0.0
        %v848 = vand.u32 %v269, 4294901760
        %849 = vmatpush1.msra.mxu0 %v848
        %850 = vmatprep.subr.mxu0 0.0
        %v851 = vand.u32 %v270, 4294901760
        %852 = vmatpush1.msra.mxu0 %v851
        %853 = vmatprep.subr.mxu0 0.0
        %v854 = vand.u32 %v271, 4294901760
        %855 = vmatpush1.msra.mxu0 %v854
        %856 = vmatprep.subr.mxu0 0.0
        %v857 = vand.u32 %v272, 4294901760
        %858 = vmatpush1.msra.mxu0 %v857
        %859 = vmatprep.subr.mxu0 0.0
        %v860 = vand.u32 %v273, 4294901760
        %861 = vmatpush1.msra.mxu0 %v860
        %862 = vmatprep.subr.mxu0 0.0
        %v863 = vand.u32 %v274, 4294901760
        %864 = vmatpush1.msra.mxu0 %v863
        %865 = vmatprep.subr.mxu0 0.0
        %v866 = vand.u32 %v275, 4294901760
        %867 = vmatpush1.msra.mxu0 %v866
        %868 = vmatprep.subr.mxu0 0.0
        %v869 = vand.u32 %v276, 4294901760
        %870 = vmatpush1.msra.mxu0 %v869
        %871 = vmatprep.subr.mxu0 0.0
        %v872 = vand.u32 %v277, 4294901760
        %873 = vmatpush1.msra.mxu0 %v872
        %874 = vmatprep.subr.mxu0 0.0
        %v875 = vand.u32 %v278, 4294901760
        %876 = vmatpush1.msra.mxu0 %v875
        %877 = vmatprep.subr.mxu0 0.0
        %v878 = vand.u32 %v279, 4294901760
        %879 = vmatpush1.msra.mxu0 %v878
        %880 = vmatprep.subr.mxu0 0.0
        %v881 = vand.u32 %v280, 4294901760
        %882 = vmatpush1.msra.mxu0 %v881
        %883 = vmatprep.subr.mxu0 0.0
        %884 = vmatpush1.msra.mxu0 0.0
        %885 = vmatprep.subr.mxu0 0.0
        %886 = vmatpush1.msra.mxu0 0.0
        %887 = vmatprep.subr.mxu0 0.0
        %888 = vmatpush1.msra.mxu0 0.0
        %889 = vmatprep.subr.mxu0 0.0
        %890 = vmatpush1.msra.mxu0 0.0
        %891 = vmatprep.subr.mxu0 0.0
        %892 = vmatpush1.msra.mxu0 0.0
        %893 = vmatprep.subr.mxu0 0.0
        %894 = vmatpush1.msra.mxu0 0.0
        %895 = vmatprep.subr.mxu0 0.0
        %896 = vmatpush1.msra.mxu0 0.0
        %897 = vmatprep.subr.mxu0 0.0
        %898 = vmatpush1.msra.mxu0 0.0
        %899 = vmatprep.subr.mxu0 0.0
        %900 = vmatpush1.msra.mxu0 0.0
        %901 = vmatprep.subr.mxu0 0.0
        %902 = vmatpush1.msra.mxu0 0.0
        %903 = vmatprep.subr.mxu0 0.0
        %904 = vmatpush1.msra.mxu0 0.0
        %905 = vmatprep.subr.mxu0 0.0
        %906 = vmatpush1.msra.mxu0 0.0
        %907 = vmatprep.subr.mxu0 0.0
        %908 = vmatpush1.msra.mxu0 0.0
        %909 = vmatprep.subr.mxu0 0.0
        %910 = vmatpush1.msra.mxu0 0.0
        %911 = vmatprep.subr.mxu0 0.0
        %912 = vmatpush1.msra.mxu0 0.0
        %913 = vmatprep.subr.mxu0 0.0
        %914 = vmatpush1.msra.mxu0 0.0
        %915 = vmatprep.mubr.f32.mxu0 0.0
        %v916 = vand.u32 %v264, 4294901760
        %917 = vmatmul.mubr.f32.gmra.mrb[0].mxu0 %v916
        %v918 = vpop.f32.mrb[0].mxu0
        %v919 = vadd.f32 %v832, %v918
        %v920 = vpop.f32.mrb[0].mxu0
        %921 = vdwg.mxu0
        %v922 = vadd.f32 %v263, %v919
        %923 = vst [vmem:[#allocation2] sm:$0xff] %v922
        // Predicated region
        $region45: #{tpu_custom_call.1} parent=31 // pred_check
          %p924 = pneg %p251
        $region46: #{tpu_custom_call.1} parent=31 // pred_check_branch
          %926 = sbr.rel (%p924) target = $region48
        $region47: #{tpu_custom_call.1} parent=31 // pred_region
          %v927 = vld [vmem:[#allocation2] sm:$0xff]
          %v928 = vmul.f32 %v927, 0.5
          %v929 = vmul.f32 %v927, 0.70710677
          %v930 = verf.f32.pop %v929
          %v931 = vadd.f32 %v930, 1.0
          %v932 = vmul.f32 %v928, %v931
          %933 = vst [vmem:[%s246] sm:$0xff] %v932
        $region48: #{tpu_custom_call.1} parent=31 // pred_fallthru
          _
        %s934 = sand.u32 %s132, 1
        %s935 = scalar_lea.sflag [#allocation5], %s934
        %s936 = sand.u32 %s132, 1
        %s937 = smul.addr %s936, 8
        %s938 = scalar_lea.vmem [#allocation8], %s937
        // Predicated region
        $region49: #{tpu_custom_call.1} parent=31 // pred_check
          %p939 = pneg %p142
        $region50: #{tpu_custom_call.1} parent=31 // pred_check_branch
          %941 = sbr.rel (%p939) target = $region52
        $region51: #{tpu_custom_call.1} parent=31 // pred_region
          %s943 = ssub.s32 128, 128
          %944 = vsyncadd %s935, %s943
          %s945 = sadd.s32 %s27, %s26
          %s946 = smul.addr %s945, 128
          %s947 = scalar_lea.hbm %s3, %s946
          %s949 = sshll.u32 %s938, 4
          %s950 = int_to_ptr.vmem [resolvable:$true] %s949
          %952 = dma.vmem_to_hbm [thread:$0]  %s950, 128, %s947, %s935
        $region52: #{tpu_custom_call.1} parent=31 // pred_fallthru
          _
      $region32: #{tpu_custom_call.1} parent=5 // pred_fallthru
        _
      %p953 = scmp.le.s32.totalorder 2, %s16
      // Predicated region
      $region53: #{tpu_custom_call.1} parent=5 // pred_check
        %p954 = pneg %p953
      $region54: #{tpu_custom_call.1} parent=5 // pred_check_branch
        %956 = sbr.rel (%p954) target = $region56
      $region55: #{tpu_custom_call.1} parent=5 // pred_region
        %s957 = ssub.s32 %s16, 2
        // Predicated region
        $region57: #{tpu_custom_call.1} parent=55 // pred_check
          %p958 = pneg %p148
        $region58: #{tpu_custom_call.1} parent=55 // pred_check_branch
          %960 = sbr.rel (%p958) target = $region60
        $region59: #{tpu_custom_call.1} parent=55 // pred_region
          %s961 = sand.u32 %s133, 1
          %s962 = scalar_lea.sflag [#allocation5], %s961
          %s963 = sand.u32 %s133, 1
          %s964 = smul.addr %s963, 8
          %s965 = scalar_lea.vmem [#allocation8], %s964
          %966 = dma.done %s962, 128
        $region60: #{tpu_custom_call.1} parent=55 // pred_fallthru
          _
      $region56: #{tpu_custom_call.1} parent=5 // pred_fallthru
        _
    $region6: #{tpu_custom_call.1} parent=1 // loop_footer
      %s20 = sadd.s32 1, %s16
    $region7: #{tpu_custom_call.1} parent=1 // loop_footer_branch
      %15 = sbr.rel target = $region3
    $region8: #{tpu_custom_call.1} parent=1 // loop_exit
      _
    %967 = vsyncpa [#allocation4], 1
    %s968 = scalar_lea.sflag [#allocation4], 1
    %969 = vsyncpa %s968, 1
    %970 = vsyncpa [#allocation7], 1
    %971 = vsyncpa [#allocation5], 1
    %s972 = scalar_lea.sflag [#allocation5], 1
    %973 = vsyncpa %s972, 1

</llo_original>
